<compile_context>
chip_gen: v6e
topology: v6e:2x2x1
jax: 0.10.0
libtpu: 0.0.40
codegen_flags: <defaults>
</compile_context>

<pallas_src>
import functools
import math

import jax
import jax.numpy as jnp
from jax.experimental import pallas as pl
from jax.experimental.pallas import tpu as pltpu

HIDDEN = 32


def _round_up(n, m):
    return ((n + m - 1) // m) * m


# ----------------------------------------------------------------------------
# Kernel
# ----------------------------------------------------------------------------
def full_model_kernel(x_ref, w_ref, b_ref, out_ref, *, B, L, offs, kin):
    """Fully fused forward pass.

    x_ref  : (2B, kin[0])        rows [0,B) = x_t, rows [B,2B) = x_tau
    w_ref  : (sum(kin), P)       K-packed, zero-padded weights; layer i lives at
                                 rows [offs[i], offs[i]+kin[i]).  Layout:
                                 0..2 encoder, 3..5 fused dynamics+decoder
                                 (block-diagonal), 6..8 dynamics.
    b_ref  : (9, P)              zero-padded biases (same layer order)
    out_ref: (3, B, P) output slab:
             [0, :, :L]    x_tau_dyn
             [1, :, :L]    z_tau_dyn     (tanh lanes of the fused layer-5)
             [1, :, L:L+D] x_t_pred      (sigmoid lanes of the fused layer-5)
             [2, :, :L]    z_tau_pred
    """
    b = b_ref[...]  # (9, P)

    def layer(h, i, act):
        # Static sublane window of the K-packed weight slab; the LHS is sliced
        # to the matching K_pad lanes (rows [fan_in, K_pad) of the weights are
        # zero, so any non-zero activation lanes in that range are harmless).
        w = w_ref[pl.ds(offs[i], kin[i]), :]
        y = jnp.dot(h[:, : kin[i]], w, preferred_element_type=jnp.float32)
        y = y + b[i : i + 1, :]
        return act(y)

    relu = lambda v: jnp.maximum(v, 0.0)

    # --- batched encoder over [x_t ; x_tau]: 3 matmuls instead of 6 -----------
    x = x_ref[...]                       # (2B, kin[0])
    h = layer(x, 0, relu)
    h = layer(h, 1, relu)
    z_enc = layer(h, 2, jnp.tanh)        # (2B, P); lanes >= L are exactly 0
    z_t = z_enc[:B]                      # encoder(x_t)
    z_tau_pred = z_enc[B:]               # encoder(x_tau)

    # --- fused dynamics + decoder on z_t (block-diagonal weights): 3 matmuls --
    h = layer(z_t, 3, relu)
    h = layer(h, 4, relu)
    pre = jnp.dot(h[:, : kin[5]], w_ref[pl.ds(offs[5], kin[5]), :],
                  preferred_element_type=jnp.float32) + b[5:6, :]
    lane = jax.lax.broadcasted_iota(jnp.int32, pre.shape, 1)
    is_tanh = lane < L
    # Single EUP pass: tanh lanes exact, sigmoid lanes via sigmoid(x)=0.5*(1+tanh(x/2)).
    t = jnp.tanh(jnp.where(is_tanh, pre, 0.5 * pre))
    fused = jnp.where(is_tanh, t, 0.5 * t + 0.5)
    # lanes [0,L) = z_tau_dyn (tanh), lanes [L,L+D) = x_t_pred (sigmoid);
    # lanes >= L (value 0.5 / x_t_pred) are never read downstream because the
    # layer-6 weight rows in [L, kin[6]) are zero-padded.

    # --- dynamics applied again on z_tau_dyn: 3 matmuls -----------------------
    h = layer(fused, 6, relu)
    h = layer(h, 7, relu)
    x_tau_dyn = layer(h, 8, jnp.tanh)    # (B, P); lanes [0,L) valid, rest 0

    # Three full-tile, lane-dense stores into one contiguous output slab.
    out_ref[0] = x_tau_dyn.astype(out_ref.dtype)
    out_ref[1] = fused.astype(out_ref.dtype)
    out_ref[2] = z_tau_pred.astype(out_ref.dtype)


# ----------------------------------------------------------------------------
# One-time parameter packing (wrapper side)
# ----------------------------------------------------------------------------
def _pad_b(bvec, P):
    bvec = bvec.reshape(-1)
    return jnp.zeros((P,), jnp.float32).at[: bvec.shape[0]].set(bvec)


def _block_diag(a, c):
    r0, c0 = a.shape
    r1, c1 = c.shape
    out = jnp.zeros((r0 + r1, c0 + c1), jnp.float32)
    out = out.at[:r0, :c0].set(a)
    out = out.at[r0:, c0:].set(c)
    return out


def pack_params(params, input_shape, lower_shape, hidden=HIDDEN):
    """Pack 18 raw (W, b) arrays into a K-packed weight slab + bias slab.

    Weight slab: (sum_i round_up(fan_in_i, 8), P) f32, layer i at sublane
    offset offs[i].  Invariant (relied on by the kernel): weight rows in
    [fan_in_i, K_pad_i) and weight cols / bias lanes >= fan_out_i are zero.
    Do this ONCE (e.g. outside the training loop).
    """
    (ew1, eb1, ew2, eb2, ew3, eb3,
     yw1, yb1, yw2, yb2, yw3, yb3,
     dw1, db1, dw2, db2, dw3, db3) = params

    D, L, H = input_shape, lower_shape, hidden
    P = _round_up(max(128, D, 2 * H, L + D), 128)   # lane (fan-out) width

    # dynamics + decoder fused (both consume z_t): block-diagonal layout.
    fw1 = jnp.concatenate([yw1, dw1], axis=1)        # (L, 2H)
    fw2 = _block_diag(yw2, dw2)                      # (2H, 2H)
    fw3 = _block_diag(yw3, dw3)                      # (2H, L+D)
    fb1 = jnp.concatenate([yb1, db1], axis=1)
    fb2 = jnp.concatenate([yb2, db2], axis=1)
    fb3 = jnp.concatenate([yb3, db3], axis=1)

    ws = [ew1, ew2, ew3, fw1, fw2, fw3, yw1, yw2, yw3]
    bs = [eb1, eb2, eb3, fb1, fb2, fb3, yb1, yb2, yb3]

    kin = tuple(_round_up(w.shape[0], 8) for w in ws)
    offs = []
    acc = 0
    for kp in kin:
        offs.append(acc)
        acc += kp
    offs = tuple(offs)

    blocks = []
    for w, kp in zip(ws, kin):
        blk = jnp.zeros((kp, P), jnp.float32)
        blk = blk.at[: w.shape[0], : w.shape[1]].set(w.astype(jnp.float32))
        blocks.append(blk)
    w_all = jnp.concatenate(blocks, axis=0)          # (sum kin, P)
    b_all = jnp.stack([_pad_b(v, P) for v in bs])    # (9, P)
    return w_all, b_all, P, offs, kin


# ----------------------------------------------------------------------------
# Forward wrapper
# ----------------------------------------------------------------------------
def full_model_forward(x_t, x_tau, packed, lower_shape):
    w_all, b_all, P, offs, kin = packed
    B, D = x_t.shape
    L = lower_shape

    # One small input slab: rows [0,B) = x_t, rows [B,2B) = x_tau.
    # No lane-pad to 128: layer 0 contracts only kin[0] = round_up(D, 8) rows.
    x_cat = jnp.concatenate([x_t, x_tau], axis=0).astype(jnp.float32)
    if D < kin[0]:
        x_cat = jnp.pad(x_cat, ((0, 0), (0, kin[0] - D)))

    vmem = pl.BlockSpec(memory_space=pltpu.VMEM)
    out = pl.pallas_call(
        functools.partial(full_model_kernel, B=B, L=L, offs=offs, kin=kin),
        out_shape=jax.ShapeDtypeStruct((3, B, P), jnp.float32),
        in_specs=[vmem, vmem, vmem],
        out_specs=vmem,
    )(x_cat, w_all, b_all)

    x_tau_dyn = out[0, :, :L]
    z_tau_dyn = out[1, :, :L]
    x_t_pred = out[1, :, L:L + D]
    z_tau_pred = out[2, :, :L]
    return x_tau_dyn, x_t_pred, z_tau_dyn, z_tau_pred


# ----------------------------------------------------------------------------
# Init (PyTorch nn.Linear default init, weights pre-transposed to (in, out))
# ----------------------------------------------------------------------------
def _init_linear(key, fan_in, fan_out):
    kw, kb = jax.random.split(key)
    bound = 1.0 / math.sqrt(fan_in)
    w = jax.random.uniform(kw, (fan_in, fan_out), jnp.float32, -bound, bound)
    b = jax.random.uniform(kb, (1, fan_out), jnp.float32, -bound, bound)
    return w, b


def init_full_model_params(key, input_shape, lower_shape, hidden=HIDDEN):
    keys = jax.random.split(key, 9)
    ew1, eb1 = _init_linear(keys[0], input_shape, hidden)   # encoder D->32
    ew2, eb2 = _init_linear(keys[1], hidden, hidden)        # encoder 32->32
    ew3, eb3 = _init_linear(keys[2], hidden, lower_shape)   # encoder 32->L
    yw1, yb1 = _init_linear(keys[3], lower_shape, hidden)   # dynamics L->32
    yw2, yb2 = _init_linear(keys[4], hidden, hidden)        # dynamics 32->32
    yw3, yb3 = _init_linear(keys[5], hidden, lower_shape)   # dynamics 32->L
    dw1, db1 = _init_linear(keys[6], lower_shape, hidden)   # decoder L->32
    dw2, db2 = _init_linear(keys[7], hidden, hidden)        # decoder 32->32
    dw3, db3 = _init_linear(keys[8], hidden, input_shape)   # decoder 32->D
    return (ew1, eb1, ew2, eb2, ew3, eb3,
            yw1, yb1, yw2, yb2, yw3, yb3,
            dw1, db1, dw2, db2, dw3, db3)


# ----------------------------------------------------------------------------
# Pure-JAX reference for correctness check
# ----------------------------------------------------------------------------
def _reference_forward(x_t, x_tau, params):
    (ew1, eb1, ew2, eb2, ew3, eb3,
     yw1, yb1, yw2, yb2, yw3, yb3,
     dw1, db1, dw2, db2, dw3, db3) = params

    hi = jax.lax.Precision.HIGHEST

    def mlp(x, w1, b1, w2, b2, w3, b3, final):
        h = jnp.maximum(jnp.dot(x, w1, precision=hi) + b1, 0.0)
        h = jnp.maximum(jnp.dot(h, w2, precision=hi) + b2, 0.0)
        return final(jnp.dot(h, w3, precision=hi) + b3)

    enc = lambda v: mlp(v, ew1, eb1, ew2, eb2, ew3, eb3, jnp.tanh)
    dyn = lambda v: mlp(v, yw1, yb1, yw2, yb2, yw3, yb3, jnp.tanh)
    dec = lambda v: mlp(v, dw1, db1, dw2, db2, dw3, db3, jax.nn.sigmoid)

    z_t = enc(x_t)
    z_tau_dyn = dyn(z_t)
    x_tau_dyn = dyn(z_tau_dyn)
    x_t_pred = dec(z_t)
    z_tau_pred = enc(x_tau)
    return x_tau_dyn, x_t_pred, z_tau_dyn, z_tau_pred


if __name__ == "__main__":
    B = 8             # batch
    INPUT_SHAPE = 16  # input_shape (D)
    LOWER_SHAPE = 4   # lower_shape (L)

    key = jax.random.PRNGKey(0)
    k_xt, k_xtau, k_params = jax.random.split(key, 3)

    x_t = jax.random.normal(k_xt, (B, INPUT_SHAPE), jnp.float32)
    x_tau = jax.random.normal(k_xtau, (B, INPUT_SHAPE), jnp.float32)
    params = init_full_model_params(k_params, INPUT_SHAPE, LOWER_SHAPE)

    # One-time packing of the 18 parameter arrays into two lane-dense slabs.
    packed = pack_params(params, INPUT_SHAPE, LOWER_SHAPE)

    outs = full_model_forward(x_t, x_tau, packed, LOWER_SHAPE)
    outs = jax.block_until_ready(outs)

    refs = _reference_forward(x_t, x_tau, params)
    for o, r in zip(outs, refs):
        assert o.shape == r.shape and o.dtype == r.dtype, (o.shape, r.shape)
        assert jnp.allclose(o, r, atol=1e-5, rtol=1e-5)

    print("KERNEL_OK")
</pallas_src>

<mosaic_0001>
module attributes {stable_mosaic.version = 11 : i64} {
  func.func @full_model_kernel(%arg0: memref<16x16xf32, #tpu.memory_space<vmem>>, %arg1: memref<288x128xf32, #tpu.memory_space<vmem>>, %arg2: memref<9x128xf32, #tpu.memory_space<vmem>>, %arg3: memref<3x8x128xf32, #tpu.memory_space<vmem>>) attributes {dimension_semantics = [], scalar_prefetch = 0 : i64, scratch_operands = 0 : i64, tpu.core_type = #tpu.core_type<tc>} {
    %c0 = arith.constant 0 : index
    %c0_0 = arith.constant 0 : index
    %0 = vector.load %arg2[%c0, %c0_0] : memref<9x128xf32, #tpu.memory_space<vmem>>, vector<9x128xf32>
    %c0_1 = arith.constant 0 : index
    %c0_2 = arith.constant 0 : index
    %1 = vector.load %arg0[%c0_1, %c0_2] : memref<16x16xf32, #tpu.memory_space<vmem>>, vector<16x16xf32>
    %c0_3 = arith.constant 0 : index
    %c0_4 = arith.constant 0 : index
    %2 = vector.load %arg1[%c0_3, %c0_4] : memref<288x128xf32, #tpu.memory_space<vmem>>, vector<16x128xf32>
    %cst = arith.constant dense<0.000000e+00> : vector<16x128xf32>
    %3 = tpu.matmul %1, %2, %cst {dimension_numbers = #tpu.dot_dimension_numbers<[1], [0], [0], [1], [0, 0, 1, 1], [], []>} : vector<16x16xf32>, vector<16x128xf32>, vector<16x128xf32> -> vector<16x128xf32>
    %4 = vector.extract_strided_slice %0 {offsets = [0, 0], sizes = [1, 128], strides = [1, 1]} : vector<9x128xf32> to vector<1x128xf32>
    %5 = vector.broadcast %4 : vector<1x128xf32> to vector<16x128xf32>
    %6 = arith.addf %3, %5 : vector<16x128xf32>
    %cst_5 = arith.constant 0.000000e+00 : f32
    %7 = vector.broadcast %cst_5 : f32 to vector<16x128xf32>
    %8 = arith.maximumf %6, %7 : vector<16x128xf32>
    %c16 = arith.constant 16 : index
    %c0_6 = arith.constant 0 : index
    %9 = vector.load %arg1[%c16, %c0_6] : memref<288x128xf32, #tpu.memory_space<vmem>>, vector<32x128xf32>
    %10 = vector.extract_strided_slice %8 {offsets = [0, 0], sizes = [16, 32], strides = [1, 1]} : vector<16x128xf32> to vector<16x32xf32>
    %cst_7 = arith.constant dense<0.000000e+00> : vector<16x128xf32>
    %11 = tpu.matmul %10, %9, %cst_7 {dimension_numbers = #tpu.dot_dimension_numbers<[1], [0], [0], [1], [0, 0, 1, 1], [], []>} : vector<16x32xf32>, vector<32x128xf32>, vector<16x128xf32> -> vector<16x128xf32>
    %12 = vector.extract_strided_slice %0 {offsets = [1, 0], sizes = [1, 128], strides = [1, 1]} : vector<9x128xf32> to vector<1x128xf32>
    %13 = vector.broadcast %12 : vector<1x128xf32> to vector<16x128xf32>
    %14 = arith.addf %11, %13 : vector<16x128xf32>
    %cst_8 = arith.constant 0.000000e+00 : f32
    %15 = vector.broadcast %cst_8 : f32 to vector<16x128xf32>
    %16 = arith.maximumf %14, %15 : vector<16x128xf32>
    %c48 = arith.constant 48 : index
    %c0_9 = arith.constant 0 : index
    %17 = vector.load %arg1[%c48, %c0_9] : memref<288x128xf32, #tpu.memory_space<vmem>>, vector<32x128xf32>
    %18 = vector.extract_strided_slice %16 {offsets = [0, 0], sizes = [16, 32], strides = [1, 1]} : vector<16x128xf32> to vector<16x32xf32>
    %cst_10 = arith.constant dense<0.000000e+00> : vector<16x128xf32>
    %19 = tpu.matmul %18, %17, %cst_10 {dimension_numbers = #tpu.dot_dimension_numbers<[1], [0], [0], [1], [0, 0, 1, 1], [], []>} : vector<16x32xf32>, vector<32x128xf32>, vector<16x128xf32> -> vector<16x128xf32>
    %20 = vector.extract_strided_slice %0 {offsets = [2, 0], sizes = [1, 128], strides = [1, 1]} : vector<9x128xf32> to vector<1x128xf32>
    %21 = vector.broadcast %20 : vector<1x128xf32> to vector<16x128xf32>
    %22 = arith.addf %19, %21 : vector<16x128xf32>
    %23 = math.tanh %22 : vector<16x128xf32>
    %24 = vector.extract_strided_slice %23 {offsets = [0, 0], sizes = [8, 128], strides = [1, 1]} : vector<16x128xf32> to vector<8x128xf32>
    %25 = vector.extract_strided_slice %23 {offsets = [8, 0], sizes = [8, 128], strides = [1, 1]} : vector<16x128xf32> to vector<8x128xf32>
    %c80 = arith.constant 80 : index
    %c0_11 = arith.constant 0 : index
    %26 = vector.load %arg1[%c80, %c0_11] : memref<288x128xf32, #tpu.memory_space<vmem>>, vector<8x128xf32>
    %27 = vector.extract_strided_slice %24 {offsets = [0, 0], sizes = [8, 8], strides = [1, 1]} : vector<8x128xf32> to vector<8x8xf32>
    %cst_12 = arith.constant dense<0.000000e+00> : vector<8x128xf32>
    %28 = tpu.matmul %27, %26, %cst_12 {dimension_numbers = #tpu.dot_dimension_numbers<[1], [0], [0], [1], [0, 0, 1, 1], [], []>} : vector<8x8xf32>, vector<8x128xf32>, vector<8x128xf32> -> vector<8x128xf32>
    %29 = vector.extract_strided_slice %0 {offsets = [3, 0], sizes = [1, 128], strides = [1, 1]} : vector<9x128xf32> to vector<1x128xf32>
    %30 = vector.broadcast %29 : vector<1x128xf32> to vector<8x128xf32>
    %31 = arith.addf %28, %30 : vector<8x128xf32>
    %cst_13 = arith.constant 0.000000e+00 : f32
    %32 = vector.broadcast %cst_13 : f32 to vector<8x128xf32>
    %33 = arith.maximumf %31, %32 : vector<8x128xf32>
    %c88 = arith.constant 88 : index
    %c0_14 = arith.constant 0 : index
    %34 = vector.load %arg1[%c88, %c0_14] : memref<288x128xf32, #tpu.memory_space<vmem>>, vector<64x128xf32>
    %35 = vector.extract_strided_slice %33 {offsets = [0, 0], sizes = [8, 64], strides = [1, 1]} : vector<8x128xf32> to vector<8x64xf32>
    %cst_15 = arith.constant dense<0.000000e+00> : vector<8x128xf32>
    %36 = tpu.matmul %35, %34, %cst_15 {dimension_numbers = #tpu.dot_dimension_numbers<[1], [0], [0], [1], [0, 0, 1, 1], [], []>} : vector<8x64xf32>, vector<64x128xf32>, vector<8x128xf32> -> vector<8x128xf32>
    %37 = vector.extract_strided_slice %0 {offsets = [4, 0], sizes = [1, 128], strides = [1, 1]} : vector<9x128xf32> to vector<1x128xf32>
    %38 = vector.broadcast %37 : vector<1x128xf32> to vector<8x128xf32>
    %39 = arith.addf %36, %38 : vector<8x128xf32>
    %cst_16 = arith.constant 0.000000e+00 : f32
    %40 = vector.broadcast %cst_16 : f32 to vector<8x128xf32>
    %41 = arith.maximumf %39, %40 : vector<8x128xf32>
    %42 = vector.extract_strided_slice %41 {offsets = [0, 0], sizes = [8, 64], strides = [1, 1]} : vector<8x128xf32> to vector<8x64xf32>
    %c152 = arith.constant 152 : index
    %c0_17 = arith.constant 0 : index
    %43 = vector.load %arg1[%c152, %c0_17] : memref<288x128xf32, #tpu.memory_space<vmem>>, vector<64x128xf32>
    %cst_18 = arith.constant dense<0.000000e+00> : vector<8x128xf32>
    %44 = tpu.matmul %42, %43, %cst_18 {dimension_numbers = #tpu.dot_dimension_numbers<[1], [0], [0], [1], [0, 0, 1, 1], [], []>} : vector<8x64xf32>, vector<64x128xf32>, vector<8x128xf32> -> vector<8x128xf32>
    %45 = vector.extract_strided_slice %0 {offsets = [5, 0], sizes = [1, 128], strides = [1, 1]} : vector<9x128xf32> to vector<1x128xf32>
    %46 = vector.broadcast %45 : vector<1x128xf32> to vector<8x128xf32>
    %47 = arith.addf %44, %46 : vector<8x128xf32>
    %48 = tpu.iota {dimensions = array<i32: 1>} : vector<8x128xi32>
    %c4_i32 = arith.constant 4 : i32
    %49 = vector.broadcast %c4_i32 : i32 to vector<8x128xi32>
    %50 = arith.cmpi slt, %48, %49 : vector<8x128xi32>
    %cst_19 = arith.constant 5.000000e-01 : f32
    %51 = vector.broadcast %cst_19 : f32 to vector<8x128xf32>
    %52 = arith.mulf %51, %47 : vector<8x128xf32>
    %53 = arith.select %50, %47, %52 : vector<8x128xi1>, vector<8x128xf32>
    %54 = math.tanh %53 : vector<8x128xf32>
    %cst_20 = arith.constant 5.000000e-01 : f32
    %55 = vector.broadcast %cst_20 : f32 to vector<8x128xf32>
    %56 = arith.mulf %55, %54 : vector<8x128xf32>
    %cst_21 = arith.constant 5.000000e-01 : f32
    %57 = vector.broadcast %cst_21 : f32 to vector<8x128xf32>
    %58 = arith.addf %56, %57 : vector<8x128xf32>
    %59 = arith.select %50, %54, %58 : vector<8x128xi1>, vector<8x128xf32>
    %c216 = arith.constant 216 : index
    %c0_22 = arith.constant 0 : index
    %60 = vector.load %arg1[%c216, %c0_22] : memref<288x128xf32, #tpu.memory_space<vmem>>, vector<8x128xf32>
    %61 = vector.extract_strided_slice %59 {offsets = [0, 0], sizes = [8, 8], strides = [1, 1]} : vector<8x128xf32> to vector<8x8xf32>
    %cst_23 = arith.constant dense<0.000000e+00> : vector<8x128xf32>
    %62 = tpu.matmul %61, %60, %cst_23 {dimension_numbers = #tpu.dot_dimension_numbers<[1], [0], [0], [1], [0, 0, 1, 1], [], []>} : vector<8x8xf32>, vector<8x128xf32>, vector<8x128xf32> -> vector<8x128xf32>
    %63 = vector.extract_strided_slice %0 {offsets = [6, 0], sizes = [1, 128], strides = [1, 1]} : vector<9x128xf32> to vector<1x128xf32>
    %64 = vector.broadcast %63 : vector<1x128xf32> to vector<8x128xf32>
    %65 = arith.addf %62, %64 : vector<8x128xf32>
    %cst_24 = arith.constant 0.000000e+00 : f32
    %66 = vector.broadcast %cst_24 : f32 to vector<8x128xf32>
    %67 = arith.maximumf %65, %66 : vector<8x128xf32>
    %c224 = arith.constant 224 : index
    %c0_25 = arith.constant 0 : index
    %68 = vector.load %arg1[%c224, %c0_25] : memref<288x128xf32, #tpu.memory_space<vmem>>, vector<32x128xf32>
    %69 = vector.extract_strided_slice %67 {offsets = [0, 0], sizes = [8, 32], strides = [1, 1]} : vector<8x128xf32> to vector<8x32xf32>
    %cst_26 = arith.constant dense<0.000000e+00> : vector<8x128xf32>
    %70 = tpu.matmul %69, %68, %cst_26 {dimension_numbers = #tpu.dot_dimension_numbers<[1], [0], [0], [1], [0, 0, 1, 1], [], []>} : vector<8x32xf32>, vector<32x128xf32>, vector<8x128xf32> -> vector<8x128xf32>
    %71 = vector.extract_strided_slice %0 {offsets = [7, 0], sizes = [1, 128], strides = [1, 1]} : vector<9x128xf32> to vector<1x128xf32>
    %72 = vector.broadcast %71 : vector<1x128xf32> to vector<8x128xf32>
    %73 = arith.addf %70, %72 : vector<8x128xf32>
    %cst_27 = arith.constant 0.000000e+00 : f32
    %74 = vector.broadcast %cst_27 : f32 to vector<8x128xf32>
    %75 = arith.maximumf %73, %74 : vector<8x128xf32>
    %c256 = arith.constant 256 : index
    %c0_28 = arith.constant 0 : index
    %76 = vector.load %arg1[%c256, %c0_28] : memref<288x128xf32, #tpu.memory_space<vmem>>, vector<32x128xf32>
    %77 = vector.extract_strided_slice %75 {offsets = [0, 0], sizes = [8, 32], strides = [1, 1]} : vector<8x128xf32> to vector<8x32xf32>
    %cst_29 = arith.constant dense<0.000000e+00> : vector<8x128xf32>
    %78 = tpu.matmul %77, %76, %cst_29 {dimension_numbers = #tpu.dot_dimension_numbers<[1], [0], [0], [1], [0, 0, 1, 1], [], []>} : vector<8x32xf32>, vector<32x128xf32>, vector<8x128xf32> -> vector<8x128xf32>
    %79 = vector.extract_strided_slice %0 {offsets = [8, 0], sizes = [1, 128], strides = [1, 1]} : vector<9x128xf32> to vector<1x128xf32>
    %80 = vector.broadcast %79 : vector<1x128xf32> to vector<8x128xf32>
    %81 = arith.addf %78, %80 : vector<8x128xf32>
    %82 = math.tanh %81 : vector<8x128xf32>
    %c0_30 = arith.constant 0 : index
    %c0_31 = arith.constant 0 : index
    %c0_32 = arith.constant 0 : index
    %83 = vector.load %arg3[%c0_30, %c0_31, %c0_32] : memref<3x8x128xf32, #tpu.memory_space<vmem>>, vector<1x8x128xf32>
    %84 = vector.shape_cast %83 : vector<1x8x128xf32> to vector<8x128xf32>
    %85 = vector.shape_cast %82 : vector<8x128xf32> to vector<1x8x128xf32>
    tpu.vector_store %arg3[%c0_30, %c0_31, %c0_32], %85 {strides = array<i32>} : memref<3x8x128xf32, #tpu.memory_space<vmem>>, vector<1x8x128xf32>,
    %c1 = arith.constant 1 : index
    %c0_33 = arith.constant 0 : index
    %c0_34 = arith.constant 0 : index
    %86 = vector.load %arg3[%c1, %c0_33, %c0_34] : memref<3x8x128xf32, #tpu.memory_space<vmem>>, vector<1x8x128xf32>
    %87 = vector.shape_cast %86 : vector<1x8x128xf32> to vector<8x128xf32>
    %88 = vector.shape_cast %59 : vector<8x128xf32> to vector<1x8x128xf32>
    tpu.vector_store %arg3[%c1, %c0_33, %c0_34], %88 {strides = array<i32>} : memref<3x8x128xf32, #tpu.memory_space<vmem>>, vector<1x8x128xf32>,
    %c2 = arith.constant 2 : index
    %c0_35 = arith.constant 0 : index
    %c0_36 = arith.constant 0 : index
    %89 = vector.load %arg3[%c2, %c0_35, %c0_36] : memref<3x8x128xf32, #tpu.memory_space<vmem>>, vector<1x8x128xf32>
    %90 = vector.shape_cast %89 : vector<1x8x128xf32> to vector<8x128xf32>
    %91 = vector.shape_cast %25 : vector<8x128xf32> to vector<1x8x128xf32>
    tpu.vector_store %arg3[%c2, %c0_35, %c0_36], %91 {strides = array<i32>} : memref<3x8x128xf32, #tpu.memory_space<vmem>>, vector<1x8x128xf32>,
    return
  }
}

</mosaic_0001>

<llo_original>
// kernel: tpu_custom_call.1
$region0: #{tpu_custom_call.1}
  #allocation0 [shape = 'u32[]', space=smem, size = 0x4, offset = 0x4, fixed_abs, tag = 'smem constant byte address 0x4 - core index']
  #allocation1 [shape = 'u32[144,128]{1,0:T(1,128)}', space=vmem, size = 0x12000, scoped, tag = 'internal scratch']
  %s0 = inlined_call_operand.hbm [shape: f32[16,16], index: 0, kind: input, shape index: {}]
  %s1 = inlined_call_operand.hbm [shape: f32[288,128], index: 1, kind: input, shape index: {}]
  %s2 = inlined_call_operand.hbm [shape: f32[9,128], index: 2, kind: input, shape index: {}]
  %s3 = inlined_call_operand.hbm [shape: f32[3,8,128], index: 3, kind: output, shape index: {}]
  %s4 = sld [smem:[#allocation0]]
  $region34: #{tpu_custom_call.1} parent=0
    _
  %s6 = ssub.s32 1, %s4
  %s7 = scalar_select 0, %s6, %s4
  $region1: #{tpu_custom_call.1} parent=0
    #allocation2 [shape = 'u8[8192]{0}', space=vmem, size = 0x2000, scoped, tag = 'input window, operand 0, single buffered']
    #allocation3 [shape = 's32[1]{0}', space=sflag, size = 0x4, scoped, tag = 'scoped memory for tpu_custom_call.1']
    #allocation4 [shape = 's32[1]{0}', space=sflag, size = 0x4, scoped, tag = 'scoped memory for tpu_custom_call.1']
    #allocation5 [shape = 'u8[147456]{0}', space=vmem, size = 0x24000, scoped, tag = 'input window, operand 1, single buffered']
    #allocation6 [shape = 's32[1]{0}', space=sflag, size = 0x4, scoped, tag = 'scoped memory for tpu_custom_call.1']
    #allocation7 [shape = 'u8[8192]{0}', space=vmem, size = 0x2000, scoped, tag = 'input window, operand 2, single buffered']
    #allocation8 [shape = 'u8[12288]{0}', space=vmem, size = 0x3000, scoped, tag = 'output window, operand 0, single buffered']
    %8 = vsyncpa [#allocation3], 0
    %9 = vsyncpa [#allocation6], 0
    %10 = vsyncpa [#allocation4], 0
    // Predicated region
    $region2: #{tpu_custom_call.1} parent=1 // pred_check
      _
    $region3: #{tpu_custom_call.1} parent=1 // pred_check_branch
      %12 = sbr.rel (0) target = $region5
    $region4: #{tpu_custom_call.1} parent=1 // pred_region
      %s14 = ssub.s32 256, 256
      %15 = vsyncadd [#allocation3], %s14
      %s16 = sshll.u32 [#allocation2], 4
      %s17 = int_to_ptr.vmem [resolvable:$true] %s16
      %22 = dma.hbm_to_vmem [thread:$0]  %s0, 256, %s17, [#allocation3], 128, 128, 8
    $region5: #{tpu_custom_call.1} parent=1 // pred_fallthru
      _
    // Predicated region
    $region6: #{tpu_custom_call.1} parent=1 // pred_check
      _
    $region7: #{tpu_custom_call.1} parent=1 // pred_check_branch
      %24 = sbr.rel (0) target = $region9
    $region8: #{tpu_custom_call.1} parent=1 // pred_region
      %s26 = ssub.s32 4608, 4608
      %27 = vsyncadd [#allocation6], %s26
      %s28 = sshll.u32 [#allocation5], 4
      %s29 = int_to_ptr.vmem [resolvable:$true] %s28
      %34 = dma.hbm_to_vmem [thread:$0]  %s1, 4608, %s29, [#allocation6], 128, 128, 8
    $region9: #{tpu_custom_call.1} parent=1 // pred_fallthru
      _
    // Predicated region
    $region10: #{tpu_custom_call.1} parent=1 // pred_check
      _
    $region11: #{tpu_custom_call.1} parent=1 // pred_check_branch
      %36 = sbr.rel (0) target = $region13
    $region12: #{tpu_custom_call.1} parent=1 // pred_region
      %s38 = ssub.s32 256, 256
      %39 = vsyncadd [#allocation6], %s38
      %s40 = sshll.u32 [#allocation7], 4
      %s41 = int_to_ptr.vmem [resolvable:$true] %s40
      %46 = dma.hbm_to_vmem [thread:$0]  %s2, 256, %s41, [#allocation6], 128, 128, 8
    $region13: #{tpu_custom_call.1} parent=1 // pred_fallthru
      _
    // Predicated region
    $region14: #{tpu_custom_call.1} parent=1 // pred_check
      _
    $region15: #{tpu_custom_call.1} parent=1 // pred_check_branch
      %48 = sbr.rel (0) target = $region17
    $region16: #{tpu_custom_call.1} parent=1 // pred_region
      %49 = dma.done [#allocation3], 256
    $region17: #{tpu_custom_call.1} parent=1 // pred_fallthru
      _
    // Predicated region
    $region18: #{tpu_custom_call.1} parent=1 // pred_check
      _
    $region19: #{tpu_custom_call.1} parent=1 // pred_check_branch
      %51 = sbr.rel (0) target = $region21
    $region20: #{tpu_custom_call.1} parent=1 // pred_region
      %52 = dma.done [#allocation6], 4608
    $region21: #{tpu_custom_call.1} parent=1 // pred_fallthru
      _
    // Predicated region
    $region22: #{tpu_custom_call.1} parent=1 // pred_check
      _
    $region23: #{tpu_custom_call.1} parent=1 // pred_check_branch
      %54 = sbr.rel (0) target = $region25
    $region24: #{tpu_custom_call.1} parent=1 // pred_region
      %55 = dma.done [#allocation6], 256
    $region25: #{tpu_custom_call.1} parent=1 // pred_fallthru
      _
    %v56 = vld [vmem:[#allocation7] sm:$0xff]
    %v57 = vld [vmem:[#allocation7 + $0x8] sm:$0x1]
    %v58 = vld [vmem:[#allocation2] sm:$0xff]
    %v59 = vld [vmem:[#allocation2 + $0x8] sm:$0xff]
    %v60 = vld [vmem:[#allocation5] sm:$0xff]
    %v61 = vld [vmem:[#allocation5 + $0x8] sm:$0xff]
    %v62 = vlaneseq
    %v63 = vshrl.u32 %v62, 7
    %v64 = vsub.s32 0, %v63
    %v65 = vrot.slane %v56, %v64
    %vm66 = vcmask 130048
    %v68 = vsel %vm66, %v58, 0
    %v71 = vsel %vm66, %v59, 0
    %73 = vmatprep.subr.mxu0 0.0
    %74 = vmatpush1.msra.mxu0 0.0
    %75 = vmatprep.subr.mxu0 0.0
    %76 = vmatpush1.msra.mxu0 0.0
    %77 = vmatprep.subr.mxu0 0.0
    %78 = vmatpush1.msra.mxu0 0.0
    %79 = vmatprep.subr.mxu0 0.0
    %80 = vmatpush1.msra.mxu0 0.0
    %81 = vmatprep.subr.mxu0 0.0
    %82 = vmatpush1.msra.mxu0 0.0
    %83 = vmatprep.subr.mxu0 0.0
    %84 = vmatpush1.msra.mxu0 0.0
    %85 = vmatprep.subr.mxu0 0.0
    %86 = vmatpush1.msra.mxu0 0.0
    %87 = vmatprep.subr.mxu0 0.0
    %88 = vmatpush1.msra.mxu0 0.0
    %89 = vmatprep.subr.mxu0 0.0
    %90 = vmatpush1.msra.mxu0 0.0
    %91 = vmatprep.subr.mxu0 0.0
    %92 = vmatpush1.msra.mxu0 0.0
    %93 = vmatprep.subr.mxu0 0.0
    %94 = vmatpush1.msra.mxu0 0.0
    %95 = vmatprep.subr.mxu0 0.0
    %96 = vmatpush1.msra.mxu0 0.0
    %97 = vmatprep.subr.mxu0 0.0
    %98 = vmatpush1.msra.mxu0 0.0
    %99 = vmatprep.subr.mxu0 0.0
    %100 = vmatpush1.msra.mxu0 0.0
    %101 = vmatprep.subr.mxu0 0.0
    %102 = vmatpush1.msra.mxu0 %v61
    %103 = vmatprep.subr.mxu0 0.0
    %104 = vmatpush1.msra.mxu0 %v60
    %105 = vmatprep.subr.mxu0 0.0
    %106 = vmatpush2.msra.mxu0 0.0
    %107 = vmatprep.subr.mxu0 0.0
    %108 = vmatpush2.msra.mxu0 0.0
    %109 = vmatprep.subr.mxu0 0.0
    %110 = vmatpush2.msra.mxu0 0.0
    %111 = vmatprep.subr.mxu0 0.0
    %112 = vmatpush2.msra.mxu0 0.0
    %113 = vmatprep.subr.mxu0 0.0
    %114 = vmatpush2.msra.mxu0 0.0
    %115 = vmatprep.subr.mxu0 0.0
    %116 = vmatpush2.msra.mxu0 0.0
    %117 = vmatprep.subr.mxu0 0.0
    %118 = vmatpush2.msra.mxu0 0.0
    %119 = vmatprep.subr.mxu0 0.0
    %120 = vmatpush2.msra.mxu0 0.0
    %121 = vmatprep.subr.mxu0 0.0
    %122 = vmatpush2.msra.mxu0 0.0
    %123 = vmatprep.subr.mxu0 0.0
    %124 = vmatpush2.msra.mxu0 0.0
    %125 = vmatprep.subr.mxu0 0.0
    %126 = vmatpush2.msra.mxu0 0.0
    %127 = vmatprep.subr.mxu0 0.0
    %128 = vmatpush2.msra.mxu0 0.0
    %129 = vmatprep.subr.mxu0 0.0
    %130 = vmatpush2.msra.mxu0 0.0
    %131 = vmatprep.subr.mxu0 0.0
    %132 = vmatpush2.msra.mxu0 0.0
    %133 = vmatprep.subr.mxu0 0.0
    %134 = vmatpush2.msra.mxu0 0.0
    %135 = vmatprep.subr.mxu0 0.0
    %136 = vmatpush2.msra.mxu0 0.0
    %137 = vmatprep.mubr.f32.mxu0 0.0
    %138 = vmatmul.mubr.f32.gmra.mxu0 %v68
    %v139 = vpop.f32.mrf.mxu0
    %v140 = vadd.f32 %v65, %v139
    %v141 = vpop.f32.mrf.mxu0
    %142 = vmatprep.mubr.f32.mxu0 0.0
    %143 = vmatmul.mubr.f32.gmra.mxu0 %v71
    %v144 = vpop.f32.mrf.mxu0
    %v145 = vadd.f32 %v65, %v144
    %v146 = vpop.f32.mrf.mxu0
    %147 = vdwg.mxu0
    %v148 = vmax.f32 %v140, 0.0
    %v149 = vmax.f32 %v145, 0.0
    %v150 = vld [vmem:[#allocation5 + $0x10] sm:$0xff]
    %v151 = vld [vmem:[#allocation5 + $0x18] sm:$0xff]
    %v152 = vld [vmem:[#allocation5 + $0x20] sm:$0xff]
    %v153 = vld [vmem:[#allocation5 + $0x28] sm:$0xff]
    %v154 = vlaneseq
    %v155 = vshrl.u32 %v154, 7
    %v156 = vsub.s32 1, %v155
    %v157 = vrot.slane %v56, %v156
    %vm158 = vcmask 261120
    %v160 = vsel %vm158, %v148, 0
    %v163 = vsel %vm158, %v149, 0
    %165 = vmatprep.subr.mxu0 0.0
    %166 = vmatpush1.msra.mxu0 0.0
    %167 = vmatprep.subr.mxu0 0.0
    %168 = vmatpush1.msra.mxu0 0.0
    %169 = vmatprep.subr.mxu0 0.0
    %170 = vmatpush1.msra.mxu0 0.0
    %171 = vmatprep.subr.mxu0 0.0
    %172 = vmatpush1.msra.mxu0 0.0
    %173 = vmatprep.subr.mxu0 0.0
    %174 = vmatpush1.msra.mxu0 0.0
    %175 = vmatprep.subr.mxu0 0.0
    %176 = vmatpush1.msra.mxu0 0.0
    %177 = vmatprep.subr.mxu0 0.0
    %178 = vmatpush1.msra.mxu0 0.0
    %179 = vmatprep.subr.mxu0 0.0
    %180 = vmatpush1.msra.mxu0 0.0
    %181 = vmatprep.subr.mxu0 0.0
    %182 = vmatpush1.msra.mxu0 0.0
    %183 = vmatprep.subr.mxu0 0.0
    %184 = vmatpush1.msra.mxu0 0.0
    %185 = vmatprep.subr.mxu0 0.0
    %186 = vmatpush1.msra.mxu0 0.0
    %187 = vmatprep.subr.mxu0 0.0
    %188 = vmatpush1.msra.mxu0 0.0
    %189 = vmatprep.subr.mxu0 0.0
    %190 = vmatpush1.msra.mxu0 %v153
    %191 = vmatprep.subr.mxu0 0.0
    %192 = vmatpush1.msra.mxu0 %v152
    %193 = vmatprep.subr.mxu0 0.0
    %194 = vmatpush1.msra.mxu0 %v151
    %195 = vmatprep.subr.mxu0 0.0
    %196 = vmatpush1.msra.mxu0 %v150
    %197 = vmatprep.subr.mxu0 0.0
    %198 = vmatpush2.msra.mxu0 0.0
    %199 = vmatprep.subr.mxu0 0.0
    %200 = vmatpush2.msra.mxu0 0.0
    %201 = vmatprep.subr.mxu0 0.0
    %202 = vmatpush2.msra.mxu0 0.0
    %203 = vmatprep.subr.mxu0 0.0
    %204 = vmatpush2.msra.mxu0 0.0
    %205 = vmatprep.subr.mxu0 0.0
    %206 = vmatpush2.msra.mxu0 0.0
    %207 = vmatprep.subr.mxu0 0.0
    %208 = vmatpush2.msra.mxu0 0.0
    %209 = vmatprep.subr.mxu0 0.0
    %210 = vmatpush2.msra.mxu0 0.0
    %211 = vmatprep.subr.mxu0 0.0
    %212 = vmatpush2.msra.mxu0 0.0
    %213 = vmatprep.subr.mxu0 0.0
    %214 = vmatpush2.msra.mxu0 0.0
    %215 = vmatprep.subr.mxu0 0.0
    %216 = vmatpush2.msra.mxu0 0.0
    %217 = vmatprep.subr.mxu0 0.0
    %218 = vmatpush2.msra.mxu0 0.0
    %219 = vmatprep.subr.mxu0 0.0
    %220 = vmatpush2.msra.mxu0 0.0
    %221 = vmatprep.subr.mxu0 0.0
    %222 = vmatpush2.msra.mxu0 0.0
    %223 = vmatprep.subr.mxu0 0.0
    %224 = vmatpush2.msra.mxu0 0.0
    %225 = vmatprep.subr.mxu0 0.0
    %226 = vmatpush2.msra.mxu0 0.0
    %227 = vmatprep.subr.mxu0 0.0
    %228 = vmatpush2.msra.mxu0 0.0
    %229 = vmatprep.mubr.f32.mxu0 0.0
    %230 = vmatmul.mubr.f32.gmra.mxu0 %v160
    %v231 = vpop.f32.mrf.mxu0
    %v232 = vadd.f32 %v157, %v231
    %v233 = vpop.f32.mrf.mxu0
    %234 = vmatprep.mubr.f32.mxu0 0.0
    %235 = vmatmul.mubr.f32.gmra.mxu0 %v163
    %v236 = vpop.f32.mrf.mxu0
    %v237 = vadd.f32 %v157, %v236
    %v238 = vpop.f32.mrf.mxu0
    %239 = vdwg.mxu0
    %v240 = vmax.f32 %v232, 0.0
    %v241 = vmax.f32 %v237, 0.0
    %v242 = vld [vmem:[#allocation5 + $0x30] sm:$0xff]
    %v243 = vld [vmem:[#allocation5 + $0x38] sm:$0xff]
    %v244 = vld [vmem:[#allocation5 + $0x40] sm:$0xff]
    %v245 = vld [vmem:[#allocation5 + $0x48] sm:$0xff]
    %v246 = vlaneseq
    %v247 = vshrl.u32 %v246, 7
    %v248 = vsub.s32 2, %v247
    %v249 = vrot.slane %v56, %v248
    %v251 = vsel %vm158, %v240, 0
    %v254 = vsel %vm158, %v241, 0
    %256 = vmatprep.subr.mxu0 0.0
    %257 = vmatpush1.msra.mxu0 0.0
    %258 = vmatprep.subr.mxu0 0.0
    %259 = vmatpush1.msra.mxu0 0.0
    %260 = vmatprep.subr.mxu0 0.0
    %261 = vmatpush1.msra.mxu0 0.0
    %262 = vmatprep.subr.mxu0 0.0
    %263 = vmatpush1.msra.mxu0 0.0
    %264 = vmatprep.subr.mxu0 0.0
    %265 = vmatpush1.msra.mxu0 0.0
    %266 = vmatprep.subr.mxu0 0.0
    %267 = vmatpush1.msra.mxu0 0.0
    %268 = vmatprep.subr.mxu0 0.0
    %269 = vmatpush1.msra.mxu0 0.0
    %270 = vmatprep.subr.mxu0 0.0
    %271 = vmatpush1.msra.mxu0 0.0
    %272 = vmatprep.subr.mxu0 0.0
    %273 = vmatpush1.msra.mxu0 0.0
    %274 = vmatprep.subr.mxu0 0.0
    %275 = vmatpush1.msra.mxu0 0.0
    %276 = vmatprep.subr.mxu0 0.0
    %277 = vmatpush1.msra.mxu0 0.0
    %278 = vmatprep.subr.mxu0 0.0
    %279 = vmatpush1.msra.mxu0 0.0
    %280 = vmatprep.subr.mxu0 0.0
    %281 = vmatpush1.msra.mxu0 %v245
    %282 = vmatprep.subr.mxu0 0.0
    %283 = vmatpush1.msra.mxu0 %v244
    %284 = vmatprep.subr.mxu0 0.0
    %285 = vmatpush1.msra.mxu0 %v243
    %286 = vmatprep.subr.mxu0 0.0
    %287 = vmatpush1.msra.mxu0 %v242
    %288 = vmatprep.subr.mxu0 0.0
    %289 = vmatpush2.msra.mxu0 0.0
    %290 = vmatprep.subr.mxu0 0.0
    %291 = vmatpush2.msra.mxu0 0.0
    %292 = vmatprep.subr.mxu0 0.0
    %293 = vmatpush2.msra.mxu0 0.0
    %294 = vmatprep.subr.mxu0 0.0
    %295 = vmatpush2.msra.mxu0 0.0
    %296 = vmatprep.subr.mxu0 0.0
    %297 = vmatpush2.msra.mxu0 0.0
    %298 = vmatprep.subr.mxu0 0.0
    %299 = vmatpush2.msra.mxu0 0.0
    %300 = vmatprep.subr.mxu0 0.0
    %301 = vmatpush2.msra.mxu0 0.0
    %302 = vmatprep.subr.mxu0 0.0
    %303 = vmatpush2.msra.mxu0 0.0
    %304 = vmatprep.subr.mxu0 0.0
    %305 = vmatpush2.msra.mxu0 0.0
    %306 = vmatprep.subr.mxu0 0.0
    %307 = vmatpush2.msra.mxu0 0.0
    %308 = vmatprep.subr.mxu0 0.0
    %309 = vmatpush2.msra.mxu0 0.0
    %310 = vmatprep.subr.mxu0 0.0
    %311 = vmatpush2.msra.mxu0 0.0
    %312 = vmatprep.subr.mxu0 0.0
    %313 = vmatpush2.msra.mxu0 0.0
    %314 = vmatprep.subr.mxu0 0.0
    %315 = vmatpush2.msra.mxu0 0.0
    %316 = vmatprep.subr.mxu0 0.0
    %317 = vmatpush2.msra.mxu0 0.0
    %318 = vmatprep.subr.mxu0 0.0
    %319 = vmatpush2.msra.mxu0 0.0
    %320 = vmatprep.mubr.f32.mxu0 0.0
    %321 = vmatmul.mubr.f32.gmra.mxu0 %v251
    %v322 = vpop.f32.mrf.mxu0
    %v323 = vadd.f32 %v249, %v322
    %v324 = vpop.f32.mrf.mxu0
    %325 = vmatprep.mubr.f32.mxu0 0.0
    %326 = vmatmul.mubr.f32.gmra.mxu0 %v254
    %v327 = vpop.f32.mrf.mxu0
    %v328 = vadd.f32 %v249, %v327
    %v329 = vpop.f32.mrf.mxu0
    %330 = vdwg.mxu0
    %v331 = vtanh.pop %v323
    %v332 = vtanh.pop %v328
    %v333 = vld [vmem:[#allocation5 + $0x50] sm:$0xff]
    %v334 = vlaneseq
    %v335 = vshrl.u32 %v334, 7
    %v336 = vsub.s32 3, %v335
    %v337 = vrot.slane %v56, %v336
    %vm338 = vcmask 64512
    %v340 = vsel %vm338, %v331, 0
    %342 = vmatprep.subr.mxu0 0.0
    %343 = vmatpush1.msra.mxu0 0.0
    %344 = vmatprep.subr.mxu0 0.0
    %345 = vmatpush1.msra.mxu0 0.0
    %346 = vmatprep.subr.mxu0 0.0
    %347 = vmatpush1.msra.mxu0 0.0
    %348 = vmatprep.subr.mxu0 0.0
    %349 = vmatpush1.msra.mxu0 0.0
    %350 = vmatprep.subr.mxu0 0.0
    %351 = vmatpush1.msra.mxu0 0.0
    %352 = vmatprep.subr.mxu0 0.0
    %353 = vmatpush1.msra.mxu0 0.0
    %354 = vmatprep.subr.mxu0 0.0
    %355 = vmatpush1.msra.mxu0 0.0
    %356 = vmatprep.subr.mxu0 0.0
    %357 = vmatpush1.msra.mxu0 0.0
    %358 = vmatprep.subr.mxu0 0.0
    %359 = vmatpush1.msra.mxu0 0.0
    %360 = vmatprep.subr.mxu0 0.0
    %361 = vmatpush1.msra.mxu0 0.0
    %362 = vmatprep.subr.mxu0 0.0
    %363 = vmatpush1.msra.mxu0 0.0
    %364 = vmatprep.subr.mxu0 0.0
    %365 = vmatpush1.msra.mxu0 0.0
    %366 = vmatprep.subr.mxu0 0.0
    %367 = vmatpush1.msra.mxu0 0.0
    %368 = vmatprep.subr.mxu0 0.0
    %369 = vmatpush1.msra.mxu0 0.0
    %370 = vmatprep.subr.mxu0 0.0
    %371 = vmatpush1.msra.mxu0 0.0
    %372 = vmatprep.subr.mxu0 0.0
    %373 = vmatpush1.msra.mxu0 %v333
    %374 = vmatprep.subr.mxu0 0.0
    %375 = vmatpush2.msra.mxu0 0.0
    %376 = vmatprep.subr.mxu0 0.0
    %377 = vmatpush2.msra.mxu0 0.0
    %378 = vmatprep.subr.mxu0 0.0
    %379 = vmatpush2.msra.mxu0 0.0
    %380 = vmatprep.subr.mxu0 0.0
    %381 = vmatpush2.msra.mxu0 0.0
    %382 = vmatprep.subr.mxu0 0.0
    %383 = vmatpush2.msra.mxu0 0.0
    %384 = vmatprep.subr.mxu0 0.0
    %385 = vmatpush2.msra.mxu0 0.0
    %386 = vmatprep.subr.mxu0 0.0
    %387 = vmatpush2.msra.mxu0 0.0
    %388 = vmatprep.subr.mxu0 0.0
    %389 = vmatpush2.msra.mxu0 0.0
    %390 = vmatprep.subr.mxu0 0.0
    %391 = vmatpush2.msra.mxu0 0.0
    %392 = vmatprep.subr.mxu0 0.0
    %393 = vmatpush2.msra.mxu0 0.0
    %394 = vmatprep.subr.mxu0 0.0
    %395 = vmatpush2.msra.mxu0 0.0
    %396 = vmatprep.subr.mxu0 0.0
    %397 = vmatpush2.msra.mxu0 0.0
    %398 = vmatprep.subr.mxu0 0.0
    %399 = vmatpush2.msra.mxu0 0.0
    %400 = vmatprep.subr.mxu0 0.0
    %401 = vmatpush2.msra.mxu0 0.0
    %402 = vmatprep.subr.mxu0 0.0
    %403 = vmatpush2.msra.mxu0 0.0
    %404 = vmatprep.subr.mxu0 0.0
    %405 = vmatpush2.msra.mxu0 0.0
    %406 = vmatprep.mubr.f32.mxu0 0.0
    %407 = vmatmul.mubr.f32.gmra.mxu0 %v340
    %v408 = vpop.f32.mrf.mxu0
    %v409 = vadd.f32 %v337, %v408
    %v410 = vpop.f32.mrf.mxu0
    %411 = vdwg.mxu0
    %v412 = vmax.f32 %v409, 0.0
    %v413 = vld [vmem:[#allocation5 + $0x58] sm:$0xff]
    %v414 = vld [vmem:[#allocation5 + $0x60] sm:$0xff]
    %v415 = vld [vmem:[#allocation5 + $0x68] sm:$0xff]
    %v416 = vld [vmem:[#allocation5 + $0x70] sm:$0xff]
    %v417 = vld [vmem:[#allocation5 + $0x78] sm:$0xff]
    %v418 = vld [vmem:[#allocation5 + $0x80] sm:$0xff]
    %v419 = vld [vmem:[#allocation5 + $0x88] sm:$0xff]
    %v420 = vld [vmem:[#allocation5 + $0x90] sm:$0xff]
    %v421 = vlaneseq
    %v422 = vshrl.u32 %v421, 7
    %v423 = vsub.s32 4, %v422
    %v424 = vrot.slane %v56, %v423
    %vm425 = vcmask 523264
    %v427 = vsel %vm425, %v412, 0
    %429 = vmatprep.subr.mxu0 0.0
    %430 = vmatpush1.msra.mxu0 0.0
    %431 = vmatprep.subr.mxu0 0.0
    %432 = vmatpush1.msra.mxu0 0.0
    %433 = vmatprep.subr.mxu0 0.0
    %434 = vmatpush1.msra.mxu0 0.0
    %435 = vmatprep.subr.mxu0 0.0
    %436 = vmatpush1.msra.mxu0 0.0
    %437 = vmatprep.subr.mxu0 0.0
    %438 = vmatpush1.msra.mxu0 0.0
    %439 = vmatprep.subr.mxu0 0.0
    %440 = vmatpush1.msra.mxu0 0.0
    %441 = vmatprep.subr.mxu0 0.0
    %442 = vmatpush1.msra.mxu0 0.0
    %443 = vmatprep.subr.mxu0 0.0
    %444 = vmatpush1.msra.mxu0 0.0
    %445 = vmatprep.subr.mxu0 0.0
    %446 = vmatpush1.msra.mxu0 %v420
    %447 = vmatprep.subr.mxu0 0.0
    %448 = vmatpush1.msra.mxu0 %v419
    %449 = vmatprep.subr.mxu0 0.0
    %450 = vmatpush1.msra.mxu0 %v418
    %451 = vmatprep.subr.mxu0 0.0
    %452 = vmatpush1.msra.mxu0 %v417
    %453 = vmatprep.subr.mxu0 0.0
    %454 = vmatpush1.msra.mxu0 %v416
    %455 = vmatprep.subr.mxu0 0.0
    %456 = vmatpush1.msra.mxu0 %v415
    %457 = vmatprep.subr.mxu0 0.0
    %458 = vmatpush1.msra.mxu0 %v414
    %459 = vmatprep.subr.mxu0 0.0
    %460 = vmatpush1.msra.mxu0 %v413
    %461 = vmatprep.subr.mxu0 0.0
    %462 = vmatpush2.msra.mxu0 0.0
    %463 = vmatprep.subr.mxu0 0.0
    %464 = vmatpush2.msra.mxu0 0.0
    %465 = vmatprep.subr.mxu0 0.0
    %466 = vmatpush2.msra.mxu0 0.0
    %467 = vmatprep.subr.mxu0 0.0
    %468 = vmatpush2.msra.mxu0 0.0
    %469 = vmatprep.subr.mxu0 0.0
    %470 = vmatpush2.msra.mxu0 0.0
    %471 = vmatprep.subr.mxu0 0.0
    %472 = vmatpush2.msra.mxu0 0.0
    %473 = vmatprep.subr.mxu0 0.0
    %474 = vmatpush2.msra.mxu0 0.0
    %475 = vmatprep.subr.mxu0 0.0
    %476 = vmatpush2.msra.mxu0 0.0
    %477 = vmatprep.subr.mxu0 0.0
    %478 = vmatpush2.msra.mxu0 0.0
    %479 = vmatprep.subr.mxu0 0.0
    %480 = vmatpush2.msra.mxu0 0.0
    %481 = vmatprep.subr.mxu0 0.0
    %482 = vmatpush2.msra.mxu0 0.0
    %483 = vmatprep.subr.mxu0 0.0
    %484 = vmatpush2.msra.mxu0 0.0
    %485 = vmatprep.subr.mxu0 0.0
    %486 = vmatpush2.msra.mxu0 0.0
    %487 = vmatprep.subr.mxu0 0.0
    %488 = vmatpush2.msra.mxu0 0.0
    %489 = vmatprep.subr.mxu0 0.0
    %490 = vmatpush2.msra.mxu0 0.0
    %491 = vmatprep.subr.mxu0 0.0
    %492 = vmatpush2.msra.mxu0 0.0
    %493 = vmatprep.mubr.f32.mxu0 0.0
    %494 = vmatmul.mubr.f32.gmra.mxu0 %v427
    %v495 = vpop.f32.mrf.mxu0
    %v496 = vadd.f32 %v424, %v495
    %v497 = vpop.f32.mrf.mxu0
    %498 = vdwg.mxu0
    %v499 = vmax.f32 %v496, 0.0
    %v500 = vld [vmem:[#allocation5 + $0x98] sm:$0xff]
    %v501 = vld [vmem:[#allocation5 + $0xa0] sm:$0xff]
    %v502 = vld [vmem:[#allocation5 + $0xa8] sm:$0xff]
    %v503 = vld [vmem:[#allocation5 + $0xb0] sm:$0xff]
    %v504 = vld [vmem:[#allocation5 + $0xb8] sm:$0xff]
    %v505 = vld [vmem:[#allocation5 + $0xc0] sm:$0xff]
    %v506 = vld [vmem:[#allocation5 + $0xc8] sm:$0xff]
    %v507 = vld [vmem:[#allocation5 + $0xd0] sm:$0xff]
    %v508 = vlaneseq
    %v509 = vshrl.u32 %v508, 7
    %v510 = vsub.s32 5, %v509
    %v511 = vrot.slane %v56, %v510
    %v513 = vsel %vm425, %v499, 0
    %515 = vmatprep.subr.mxu0 0.0
    %516 = vmatpush1.msra.mxu0 0.0
    %517 = vmatprep.subr.mxu0 0.0
    %518 = vmatpush1.msra.mxu0 0.0
    %519 = vmatprep.subr.mxu0 0.0
    %520 = vmatpush1.msra.mxu0 0.0
    %521 = vmatprep.subr.mxu0 0.0
    %522 = vmatpush1.msra.mxu0 0.0
    %523 = vmatprep.subr.mxu0 0.0
    %524 = vmatpush1.msra.mxu0 0.0
    %525 = vmatprep.subr.mxu0 0.0
    %526 = vmatpush1.msra.mxu0 0.0
    %527 = vmatprep.subr.mxu0 0.0
    %528 = vmatpush1.msra.mxu0 0.0
    %529 = vmatprep.subr.mxu0 0.0
    %530 = vmatpush1.msra.mxu0 0.0
    %531 = vmatprep.subr.mxu0 0.0
    %532 = vmatpush1.msra.mxu0 %v507
    %533 = vmatprep.subr.mxu0 0.0
    %534 = vmatpush1.msra.mxu0 %v506
    %535 = vmatprep.subr.mxu0 0.0
    %536 = vmatpush1.msra.mxu0 %v505
    %537 = vmatprep.subr.mxu0 0.0
    %538 = vmatpush1.msra.mxu0 %v504
    %539 = vmatprep.subr.mxu0 0.0
    %540 = vmatpush1.msra.mxu0 %v503
    %541 = vmatprep.subr.mxu0 0.0
    %542 = vmatpush1.msra.mxu0 %v502
    %543 = vmatprep.subr.mxu0 0.0
    %544 = vmatpush1.msra.mxu0 %v501
    %545 = vmatprep.subr.mxu0 0.0
    %546 = vmatpush1.msra.mxu0 %v500
    %547 = vmatprep.subr.mxu0 0.0
    %548 = vmatpush2.msra.mxu0 0.0
    %549 = vmatprep.subr.mxu0 0.0
    %550 = vmatpush2.msra.mxu0 0.0
    %551 = vmatprep.subr.mxu0 0.0
    %552 = vmatpush2.msra.mxu0 0.0
    %553 = vmatprep.subr.mxu0 0.0
    %554 = vmatpush2.msra.mxu0 0.0
    %555 = vmatprep.subr.mxu0 0.0
    %556 = vmatpush2.msra.mxu0 0.0
    %557 = vmatprep.subr.mxu0 0.0
    %558 = vmatpush2.msra.mxu0 0.0
    %559 = vmatprep.subr.mxu0 0.0
    %560 = vmatpush2.msra.mxu0 0.0
    %561 = vmatprep.subr.mxu0 0.0
    %562 = vmatpush2.msra.mxu0 0.0
    %563 = vmatprep.subr.mxu0 0.0
    %564 = vmatpush2.msra.mxu0 0.0
    %565 = vmatprep.subr.mxu0 0.0
    %566 = vmatpush2.msra.mxu0 0.0
    %567 = vmatprep.subr.mxu0 0.0
    %568 = vmatpush2.msra.mxu0 0.0
    %569 = vmatprep.subr.mxu0 0.0
    %570 = vmatpush2.msra.mxu0 0.0
    %571 = vmatprep.subr.mxu0 0.0
    %572 = vmatpush2.msra.mxu0 0.0
    %573 = vmatprep.subr.mxu0 0.0
    %574 = vmatpush2.msra.mxu0 0.0
    %575 = vmatprep.subr.mxu0 0.0
    %576 = vmatpush2.msra.mxu0 0.0
    %577 = vmatprep.subr.mxu0 0.0
    %578 = vmatpush2.msra.mxu0 0.0
    %579 = vmatprep.mubr.f32.mxu0 0.0
    %580 = vmatmul.mubr.f32.gmra.mxu0 %v513
    %v581 = vpop.f32.mrf.mxu0
    %v582 = vadd.f32 %v511, %v581
    %v583 = vpop.f32.mrf.mxu0
    %584 = vdwg.mxu0
    %v585 = vlaneseq
    %v586 = vand.u32 %v585, 127
    %vm587 = vcmp.lt.s32.totalorder %v586, 4
    %v588 = vmul.f32 %v582, 0.5
    %v589 = vsel %vm587, %v582, %v588
    %v590 = vtanh.pop %v589
    %v591 = vmul.f32 %v590, 0.5
    %v592 = vadd.f32 %v591, 0.5
    %v593 = vsel %vm587, %v590, %v592
    %v594 = vld [vmem:[#allocation5 + $0xd8] sm:$0xff]
    %v595 = vlaneseq
    %v596 = vshrl.u32 %v595, 7
    %v597 = vsub.s32 6, %v596
    %v598 = vrot.slane %v56, %v597
    %v600 = vsel %vm338, %v593, 0
    %602 = vmatprep.subr.mxu0 0.0
    %603 = vmatpush1.msra.mxu0 0.0
    %604 = vmatprep.subr.mxu0 0.0
    %605 = vmatpush1.msra.mxu0 0.0
    %606 = vmatprep.subr.mxu0 0.0
    %607 = vmatpush1.msra.mxu0 0.0
    %608 = vmatprep.subr.mxu0 0.0
    %609 = vmatpush1.msra.mxu0 0.0
    %610 = vmatprep.subr.mxu0 0.0
    %611 = vmatpush1.msra.mxu0 0.0
    %612 = vmatprep.subr.mxu0 0.0
    %613 = vmatpush1.msra.mxu0 0.0
    %614 = vmatprep.subr.mxu0 0.0
    %615 = vmatpush1.msra.mxu0 0.0
    %616 = vmatprep.subr.mxu0 0.0
    %617 = vmatpush1.msra.mxu0 0.0
    %618 = vmatprep.subr.mxu0 0.0
    %619 = vmatpush1.msra.mxu0 0.0
    %620 = vmatprep.subr.mxu0 0.0
    %621 = vmatpush1.msra.mxu0 0.0
    %622 = vmatprep.subr.mxu0 0.0
    %623 = vmatpush1.msra.mxu0 0.0
    %624 = vmatprep.subr.mxu0 0.0
    %625 = vmatpush1.msra.mxu0 0.0
    %626 = vmatprep.subr.mxu0 0.0
    %627 = vmatpush1.msra.mxu0 0.0
    %628 = vmatprep.subr.mxu0 0.0
    %629 = vmatpush1.msra.mxu0 0.0
    %630 = vmatprep.subr.mxu0 0.0
    %631 = vmatpush1.msra.mxu0 0.0
    %632 = vmatprep.subr.mxu0 0.0
    %633 = vmatpush1.msra.mxu0 %v594
    %634 = vmatprep.subr.mxu0 0.0
    %635 = vmatpush2.msra.mxu0 0.0
    %636 = vmatprep.subr.mxu0 0.0
    %637 = vmatpush2.msra.mxu0 0.0
    %638 = vmatprep.subr.mxu0 0.0
    %639 = vmatpush2.msra.mxu0 0.0
    %640 = vmatprep.subr.mxu0 0.0
    %641 = vmatpush2.msra.mxu0 0.0
    %642 = vmatprep.subr.mxu0 0.0
    %643 = vmatpush2.msra.mxu0 0.0
    %644 = vmatprep.subr.mxu0 0.0
    %645 = vmatpush2.msra.mxu0 0.0
    %646 = vmatprep.subr.mxu0 0.0
    %647 = vmatpush2.msra.mxu0 0.0
    %648 = vmatprep.subr.mxu0 0.0
    %649 = vmatpush2.msra.mxu0 0.0
    %650 = vmatprep.subr.mxu0 0.0
    %651 = vmatpush2.msra.mxu0 0.0
    %652 = vmatprep.subr.mxu0 0.0
    %653 = vmatpush2.msra.mxu0 0.0
    %654 = vmatprep.subr.mxu0 0.0
    %655 = vmatpush2.msra.mxu0 0.0
    %656 = vmatprep.subr.mxu0 0.0
    %657 = vmatpush2.msra.mxu0 0.0
    %658 = vmatprep.subr.mxu0 0.0
    %659 = vmatpush2.msra.mxu0 0.0
    %660 = vmatprep.subr.mxu0 0.0
    %661 = vmatpush2.msra.mxu0 0.0
    %662 = vmatprep.subr.mxu0 0.0
    %663 = vmatpush2.msra.mxu0 0.0
    %664 = vmatprep.subr.mxu0 0.0
    %665 = vmatpush2.msra.mxu0 0.0
    %666 = vmatprep.mubr.f32.mxu0 0.0
    %667 = vmatmul.mubr.f32.gmra.mxu0 %v600
    %v668 = vpop.f32.mrf.mxu0
    %v669 = vadd.f32 %v598, %v668
    %v670 = vpop.f32.mrf.mxu0
    %671 = vdwg.mxu0
    %v672 = vmax.f32 %v669, 0.0
    %v673 = vld [vmem:[#allocation5 + $0xe0] sm:$0xff]
    %v674 = vld [vmem:[#allocation5 + $0xe8] sm:$0xff]
    %v675 = vld [vmem:[#allocation5 + $0xf0] sm:$0xff]
    %v676 = vld [vmem:[#allocation5 + $0xf8] sm:$0xff]
    %v677 = vlaneseq
    %v678 = vshrl.u32 %v677, 7
    %v679 = vsub.s32 7, %v678
    %v680 = vrot.slane %v56, %v679
    %v682 = vsel %vm158, %v672, 0
    %684 = vmatprep.subr.mxu0 0.0
    %685 = vmatpush1.msra.mxu0 0.0
    %686 = vmatprep.subr.mxu0 0.0
    %687 = vmatpush1.msra.mxu0 0.0
    %688 = vmatprep.subr.mxu0 0.0
    %689 = vmatpush1.msra.mxu0 0.0
    %690 = vmatprep.subr.mxu0 0.0
    %691 = vmatpush1.msra.mxu0 0.0
    %692 = vmatprep.subr.mxu0 0.0
    %693 = vmatpush1.msra.mxu0 0.0
    %694 = vmatprep.subr.mxu0 0.0
    %695 = vmatpush1.msra.mxu0 0.0
    %696 = vmatprep.subr.mxu0 0.0
    %697 = vmatpush1.msra.mxu0 0.0
    %698 = vmatprep.subr.mxu0 0.0
    %699 = vmatpush1.msra.mxu0 0.0
    %700 = vmatprep.subr.mxu0 0.0
    %701 = vmatpush1.msra.mxu0 0.0
    %702 = vmatprep.subr.mxu0 0.0
    %703 = vmatpush1.msra.mxu0 0.0
    %704 = vmatprep.subr.mxu0 0.0
    %705 = vmatpush1.msra.mxu0 0.0
    %706 = vmatprep.subr.mxu0 0.0
    %707 = vmatpush1.msra.mxu0 0.0
    %708 = vmatprep.subr.mxu0 0.0
    %709 = vmatpush1.msra.mxu0 %v676
    %710 = vmatprep.subr.mxu0 0.0
    %711 = vmatpush1.msra.mxu0 %v675
    %712 = vmatprep.subr.mxu0 0.0
    %713 = vmatpush1.msra.mxu0 %v674
    %714 = vmatprep.subr.mxu0 0.0
    %715 = vmatpush1.msra.mxu0 %v673
    %716 = vmatprep.subr.mxu0 0.0
    %717 = vmatpush2.msra.mxu0 0.0
    %718 = vmatprep.subr.mxu0 0.0
    %719 = vmatpush2.msra.mxu0 0.0
    %720 = vmatprep.subr.mxu0 0.0
    %721 = vmatpush2.msra.mxu0 0.0
    %722 = vmatprep.subr.mxu0 0.0
    %723 = vmatpush2.msra.mxu0 0.0
    %724 = vmatprep.subr.mxu0 0.0
    %725 = vmatpush2.msra.mxu0 0.0
    %726 = vmatprep.subr.mxu0 0.0
    %727 = vmatpush2.msra.mxu0 0.0
    %728 = vmatprep.subr.mxu0 0.0
    %729 = vmatpush2.msra.mxu0 0.0
    %730 = vmatprep.subr.mxu0 0.0
    %731 = vmatpush2.msra.mxu0 0.0
    %732 = vmatprep.subr.mxu0 0.0
    %733 = vmatpush2.msra.mxu0 0.0
    %734 = vmatprep.subr.mxu0 0.0
    %735 = vmatpush2.msra.mxu0 0.0
    %736 = vmatprep.subr.mxu0 0.0
    %737 = vmatpush2.msra.mxu0 0.0
    %738 = vmatprep.subr.mxu0 0.0
    %739 = vmatpush2.msra.mxu0 0.0
    %740 = vmatprep.subr.mxu0 0.0
    %741 = vmatpush2.msra.mxu0 0.0
    %742 = vmatprep.subr.mxu0 0.0
    %743 = vmatpush2.msra.mxu0 0.0
    %744 = vmatprep.subr.mxu0 0.0
    %745 = vmatpush2.msra.mxu0 0.0
    %746 = vmatprep.subr.mxu0 0.0
    %747 = vmatpush2.msra.mxu0 0.0
    %748 = vmatprep.mubr.f32.mxu0 0.0
    %749 = vmatmul.mubr.f32.gmra.mxu0 %v682
    %v750 = vpop.f32.mrf.mxu0
    %v751 = vadd.f32 %v680, %v750
    %v752 = vpop.f32.mrf.mxu0
    %753 = vdwg.mxu0
    %v754 = vmax.f32 %v751, 0.0
    %v755 = vld [vmem:[#allocation5 + $0x100] sm:$0xff]
    %v756 = vld [vmem:[#allocation5 + $0x108] sm:$0xff]
    %v757 = vld [vmem:[#allocation5 + $0x110] sm:$0xff]
    %v758 = vld [vmem:[#allocation5 + $0x118] sm:$0xff]
    %v759 = vlaneseq
    %v760 = vshrl.u32 %v759, 7
    %v761 = vsub.s32 0, %v760
    %v762 = vrot.slane %v57, %v761
    %v764 = vsel %vm158, %v754, 0
    %766 = vmatprep.subr.mxu0 0.0
    %767 = vmatpush1.msra.mxu0 0.0
    %768 = vmatprep.subr.mxu0 0.0
    %769 = vmatpush1.msra.mxu0 0.0
    %770 = vmatprep.subr.mxu0 0.0
    %771 = vmatpush1.msra.mxu0 0.0
    %772 = vmatprep.subr.mxu0 0.0
    %773 = vmatpush1.msra.mxu0 0.0
    %774 = vmatprep.subr.mxu0 0.0
    %775 = vmatpush1.msra.mxu0 0.0
    %776 = vmatprep.subr.mxu0 0.0
    %777 = vmatpush1.msra.mxu0 0.0
    %778 = vmatprep.subr.mxu0 0.0
    %779 = vmatpush1.msra.mxu0 0.0
    %780 = vmatprep.subr.mxu0 0.0
    %781 = vmatpush1.msra.mxu0 0.0
    %782 = vmatprep.subr.mxu0 0.0
    %783 = vmatpush1.msra.mxu0 0.0
    %784 = vmatprep.subr.mxu0 0.0
    %785 = vmatpush1.msra.mxu0 0.0
    %786 = vmatprep.subr.mxu0 0.0
    %787 = vmatpush1.msra.mxu0 0.0
    %788 = vmatprep.subr.mxu0 0.0
    %789 = vmatpush1.msra.mxu0 0.0
    %790 = vmatprep.subr.mxu0 0.0
    %791 = vmatpush1.msra.mxu0 %v758
    %792 = vmatprep.subr.mxu0 0.0
    %793 = vmatpush1.msra.mxu0 %v757
    %794 = vmatprep.subr.mxu0 0.0
    %795 = vmatpush1.msra.mxu0 %v756
    %796 = vmatprep.subr.mxu0 0.0
    %797 = vmatpush1.msra.mxu0 %v755
    %798 = vmatprep.subr.mxu0 0.0
    %799 = vmatpush2.msra.mxu0 0.0
    %800 = vmatprep.subr.mxu0 0.0
    %801 = vmatpush2.msra.mxu0 0.0
    %802 = vmatprep.subr.mxu0 0.0
    %803 = vmatpush2.msra.mxu0 0.0
    %804 = vmatprep.subr.mxu0 0.0
    %805 = vmatpush2.msra.mxu0 0.0
    %806 = vmatprep.subr.mxu0 0.0
    %807 = vmatpush2.msra.mxu0 0.0
    %808 = vmatprep.subr.mxu0 0.0
    %809 = vmatpush2.msra.mxu0 0.0
    %810 = vmatprep.subr.mxu0 0.0
    %811 = vmatpush2.msra.mxu0 0.0
    %812 = vmatprep.subr.mxu0 0.0
    %813 = vmatpush2.msra.mxu0 0.0
    %814 = vmatprep.subr.mxu0 0.0
    %815 = vmatpush2.msra.mxu0 0.0
    %816 = vmatprep.subr.mxu0 0.0
    %817 = vmatpush2.msra.mxu0 0.0
    %818 = vmatprep.subr.mxu0 0.0
    %819 = vmatpush2.msra.mxu0 0.0
    %820 = vmatprep.subr.mxu0 0.0
    %821 = vmatpush2.msra.mxu0 0.0
    %822 = vmatprep.subr.mxu0 0.0
    %823 = vmatpush2.msra.mxu0 0.0
    %824 = vmatprep.subr.mxu0 0.0
    %825 = vmatpush2.msra.mxu0 0.0
    %826 = vmatprep.subr.mxu0 0.0
    %827 = vmatpush2.msra.mxu0 0.0
    %828 = vmatprep.subr.mxu0 0.0
    %829 = vmatpush2.msra.mxu0 0.0
    %830 = vmatprep.mubr.f32.mxu0 0.0
    %831 = vmatmul.mubr.f32.gmra.mxu0 %v764
    %v832 = vpop.f32.mrf.mxu0
    %v833 = vadd.f32 %v762, %v832
    %v834 = vpop.f32.mrf.mxu0
    %835 = vdwg.mxu0
    %v836 = vtanh.pop %v833
    %837 = vst [vmem:[#allocation8] sm:$0xff] %v836
    %s838 = scalar_lea.vmem [#allocation8], 8
    %839 = vst [vmem:[%s838] sm:$0xff] %v593
    %s840 = scalar_lea.vmem [#allocation8], 16
    %841 = vst [vmem:[%s840] sm:$0xff] %v332
    // Predicated region
    $region26: #{tpu_custom_call.1} parent=1 // pred_check
      _
    $region27: #{tpu_custom_call.1} parent=1 // pred_check_branch
      %843 = sbr.rel (0) target = $region29
    $region28: #{tpu_custom_call.1} parent=1 // pred_region
      %s845 = ssub.s32 384, 384
      %846 = vsyncadd [#allocation4], %s845
      %s847 = sshll.u32 [#allocation8], 4
      %s848 = int_to_ptr.vmem [resolvable:$true] %s847
      %853 = dma.vmem_to_hbm [thread:$0]  %s848, 384, %s3, [#allocation4], 128, 128, 8
    $region29: #{tpu_custom_call.1} parent=1 // pred_fallthru
      _
    // Predicated region
    $region30: #{tpu_custom_call.1} parent=1 // pred_check
      _
    $region31: #{tpu_custom_call.1} parent=1 // pred_check_branch
      %855 = sbr.rel (0) target = $region33
    $region32: #{tpu_custom_call.1} parent=1 // pred_region
      %856 = dma.done [#allocation4], 384
    $region33: #{tpu_custom_call.1} parent=1 // pred_fallthru
      _
    %857 = vsyncpa [#allocation3], 1
    %858 = vsyncpa [#allocation6], 1
    %859 = vsyncpa [#allocation4], 1

</llo_original>
